<compile_context>
chip_gen: v7x
topology: tpu7x:2x2x1
jax: 0.10.0
libtpu: 0.0.40
codegen_flags: <defaults>
</compile_context>

<pallas_src>
import functools

import jax
import jax.numpy as jnp
from jax import lax
from jax.experimental import pallas as pl
from jax.experimental.pallas import tpu as pltpu


# VMEM sizing: keep estimated per-step footprint under ~40 MiB (safe for
# v7x's 64 MiB/TC with 2-deep pipelining headroom) and raise the scoped limit
# above v5e's 16 MiB / v6e's 32 MiB defaults.
_VMEM_BUDGET = 40 << 20
_VMEM_LIMIT = 48 << 20


def _choose_seq_tile(s_pad, hidden, itemsize, *, max_rows=4096,
                     target_bytes=2 << 20, vmem_budget=_VMEM_BUDGET):
    """Largest multiple of 8 dividing s_pad with ~target_bytes per block."""
    per_row_hbm = hidden * itemsize
    # Per-step VMEM estimate: double-buffered in/pos/out tiles plus ~3 f32
    # LayerNorm temporaries of the same (TS, H) shape.
    per_row_vmem = hidden * (6 * itemsize + 3 * 4)
    cap = min(max_rows,
              max(8, target_bytes // per_row_hbm),
              max(8, vmem_budget // per_row_vmem),
              s_pad)
    cap = max(8, (cap // 8) * 8)
    best, t = 8, 8
    while t <= cap:
        if s_pad % t == 0:
            best = t
        t += 8
    return best


def _ln_affine(x, gamma_ref, beta_ref, eps, out_dtype):
    """LayerNorm (f32 stats) + affine on an (TS, H) f32 tile."""
    mean = jnp.mean(x, axis=-1, keepdims=True)
    var = jnp.mean(jnp.square(x - mean), axis=-1, keepdims=True)
    xn = (x - mean) * lax.rsqrt(var + eps)
    g = gamma_ref[...].astype(jnp.float32)          # (1, H) broadcast
    b = beta_ref[...].astype(jnp.float32)
    return (xn * g + b).astype(out_dtype)


def _addln_kernel(x_ref, pos_ref, gamma_ref, beta_ref, out_ref, *, eps):
    # x_ref:   (1, TS, H) pre-gathered word-embedding rows (aliased w/ out)
    # pos_ref: (TS, H)    contiguous position rows (re-used across batch steps)
    x = x_ref[0].astype(jnp.float32) + pos_ref[...].astype(jnp.float32)
    out_ref[...] = _ln_affine(x, gamma_ref, beta_ref, eps, out_ref.dtype)[None]
    # TODO(synk): nn.Dropout is identity in eval mode; training-mode dropout
    # (pltpu.prng_seed + pltpu.stateful_bernoulli) is not implemented.


def _fused_gather_kernel(ids_ref, word_hbm, pos_ref, gamma_ref, beta_ref,
                         out_ref, gbuf, sem, *, eps, TS, S_pad):
    # ids_ref:  (B*S_pad,) int32 token ids, scalar-prefetched into SMEM
    # word_hbm: (vocab, H) embedding table left in HBM (memory_space=pl.ANY)
    # gbuf:     (2, TS, H) VMEM gather buffer, double-buffered over batch steps
    # sem:      DMA semaphore per buffer slot
    j = pl.program_id(0)                  # seq-tile index (outer, "parallel")
    b = pl.program_id(1)                  # batch index (inner, "arbitrary")
    nb = pl.num_programs(1)

    def issue_gather(b_idx, slot):
        base = b_idx * S_pad + j * TS
        @pl.loop(0, TS)
        def _(t):
            tok = ids_ref[base + t]
            pltpu.make_async_copy(
                word_hbm.at[pl.ds(tok, 1), :],
                gbuf.at[slot, pl.ds(t, 1), :],
                sem.at[slot],
            ).start()

    slot = b % 2

    @pl.when(b == 0)                       # prime this seq tile's pipeline
    def _():
        issue_gather(0, 0)

    @pl.when(b + 1 < nb)                   # prefetch next batch element's rows
    def _():
        issue_gather(b + 1, 1 - slot)
    # TODO(synk): gather prefetch only overlaps within a seq tile (batch axis);
    # overlapping across seq tiles would need core-aware next-step logic.

    # Wait for all TS row DMAs of the current slot (DMA sems count bytes, so a
    # single descriptor covering the whole (TS, H) slot waits for all rows).
    pltpu.make_async_copy(gbuf.at[slot], gbuf.at[slot], sem.at[slot]).wait()

    x = gbuf[slot].astype(jnp.float32) + pos_ref[...].astype(jnp.float32)
    out_ref[...] = _ln_affine(x, gamma_ref, beta_ref, eps, out_ref.dtype)[None]
    # TODO(synk): training-mode dropout not implemented (eval-mode identity).


def electra_embeddings(input_ids, word_emb, pos_emb, gamma, beta,
                       position_ids=None, past_key_values_length=0,
                       eps=1e-12, seq_tile=None, gather_mode="auto"):
    """Pallas-fused ElectraEmbeddings forward.  Returns (B, S, H)."""
    input_ids = jnp.asarray(input_ids)
    B, S = input_ids.shape
    V, H = word_emb.shape
    dtype = word_emb.dtype
    itemsize = jnp.dtype(dtype).itemsize

    # Pad sequence length to a sublane multiple; slice the output back.
    S_pad = ((S + 7) // 8) * 8

    if gather_mode == "auto":
        # Fused in-kernel gather only pays off when one embedding row is big
        # enough (>= ~2 KiB) that per-row DMAs are not descriptor/latency bound.
        gather_mode = "fused" if H * itemsize >= 2048 else "xla"

    # Position rows are contiguous (arange + past) -> slice the table once.
    if position_ids is None:
        pos_rows = lax.dynamic_slice_in_dim(
            pos_emb, past_key_values_length, S, axis=0)               # (S, H)
    else:
        # TODO(synk): per-batch-varying position_ids are not supported; the
        # module's registered buffer is (1, max_pos) so all rows share it.
        pos_ids_row = jnp.asarray(position_ids).reshape(-1, S)[0].astype(jnp.int32)
        pos_rows = jnp.take(pos_emb, pos_ids_row, axis=0)             # (S, H)
    if S_pad != S:
        pos_rows = jnp.pad(pos_rows, ((0, S_pad - S), (0, 0)))

    gamma2 = gamma.reshape(1, H)
    beta2 = beta.reshape(1, H)

    if seq_tile is not None:
        TS = int(seq_tile)
    else:
        TS = _choose_seq_tile(S_pad, H, itemsize,
                              max_rows=512 if gather_mode == "fused" else 4096)
    assert S_pad % TS == 0 and TS % 8 == 0, (S_pad, TS)
    grid = (S_pad // TS, B)       # batch innermost -> pos tile reused in VMEM

    if gather_mode == "xla":
        # XLA gather, then fused add + LayerNorm + affine; the gathered slab
        # is aliased to the output and normalized in place.
        inputs_embeds = jnp.take(word_emb, input_ids.astype(jnp.int32), axis=0)
        if S_pad != S:
            inputs_embeds = jnp.pad(inputs_embeds,
                                    ((0, 0), (0, S_pad - S), (0, 0)))
        out = pl.pallas_call(
            functools.partial(_addln_kernel, eps=eps),
            out_shape=jax.ShapeDtypeStruct((B, S_pad, H), dtype),
            grid_spec=pltpu.PrefetchScalarGridSpec(
                num_scalar_prefetch=0,
                grid=grid,
                in_specs=[
                    pl.BlockSpec((1, TS, H), lambda j, b: (b, j, 0)),
                    pl.BlockSpec((TS, H), lambda j, b: (j, 0)),
                    pl.BlockSpec((1, H), lambda j, b: (0, 0)),
                    pl.BlockSpec((1, H), lambda j, b: (0, 0)),
                ],
                out_specs=pl.BlockSpec((1, TS, H), lambda j, b: (b, j, 0)),
            ),
            compiler_params=pltpu.CompilerParams(
                dimension_semantics=("parallel", "parallel"),
                vmem_limit_bytes=_VMEM_LIMIT),
            input_output_aliases={0: 0},
        )(inputs_embeds, pos_rows, gamma2, beta2)
    else:
        ids = input_ids.astype(jnp.int32)
        if S_pad != S:
            ids = jnp.pad(ids, ((0, 0), (0, S_pad - S)))
        ids_flat = ids.reshape(-1)                        # (B*S_pad,) -> SMEM
        out = pl.pallas_call(
            functools.partial(_fused_gather_kernel, eps=eps, TS=TS, S_pad=S_pad),
            out_shape=jax.ShapeDtypeStruct((B, S_pad, H), dtype),
            grid_spec=pltpu.PrefetchScalarGridSpec(
                num_scalar_prefetch=1,
                grid=grid,
                in_specs=[
                    pl.BlockSpec(memory_space=pl.ANY),                 # word_emb (HBM)
                    pl.BlockSpec((TS, H), lambda j, b, ids: (j, 0)),   # pos tile
                    pl.BlockSpec((1, H), lambda j, b, ids: (0, 0)),    # gamma
                    pl.BlockSpec((1, H), lambda j, b, ids: (0, 0)),    # beta
                ],
                out_specs=pl.BlockSpec((1, TS, H), lambda j, b, ids: (b, j, 0)),
                scratch_shapes=[
                    pltpu.VMEM((2, TS, H), dtype),       # double-buffered gather
                    pltpu.SemaphoreType.DMA((2,)),
                ],
            ),
            compiler_params=pltpu.CompilerParams(
                # Inner batch axis must stay un-sharded ("arbitrary"): the
                # gather double-buffer is primed at b == 0 and prefetches b+1.
                dimension_semantics=("parallel", "arbitrary"),
                vmem_limit_bytes=_VMEM_LIMIT),
        )(ids_flat, word_emb, pos_rows, gamma2, beta2)

    if S_pad != S:
        out = out[:, :S, :]
    return out


def reference(input_ids, word_emb, pos_emb, gamma, beta,
              position_ids=None, past_key_values_length=0, eps=1e-12):
    B, S = input_ids.shape
    if position_ids is None:
        pos_ids = jnp.arange(S, dtype=jnp.int32) + past_key_values_length
    else:
        pos_ids = jnp.asarray(position_ids).reshape(-1, S)[0].astype(jnp.int32)
    x = (word_emb[input_ids].astype(jnp.float32)
         + pos_emb[pos_ids].astype(jnp.float32)[None, :, :])
    mean = jnp.mean(x, axis=-1, keepdims=True)
    var = jnp.mean(jnp.square(x - mean), axis=-1, keepdims=True)
    return ((x - mean) * lax.rsqrt(var + eps)
            * gamma.astype(jnp.float32) + beta.astype(jnp.float32))


if __name__ == "__main__":
    key = jax.random.PRNGKey(0)

    def make_params(k, vocab, max_pos, H, dtype=jnp.float32):
        kw, kp = jax.random.split(k)
        w = (0.02 * jax.random.normal(kw, (vocab, H), dtype=jnp.float32)).astype(dtype)
        w = w.at[0].set(0)   # padding_idx row is zero-initialized in nn.Embedding
        p = (0.02 * jax.random.normal(kp, (max_pos, H), dtype=jnp.float32)).astype(dtype)
        g = jnp.ones((H,), jnp.float32)
        b = jnp.zeros((H,), jnp.float32)
        return w, p, g, b

    @functools.partial(jax.jit, static_argnames=("past_len", "gather_mode"))
    def fwd(ids, w, p, g, b, past_len=0, gather_mode="auto"):
        return electra_embeddings(ids, w, p, g, b,
                                  past_key_values_length=past_len,
                                  gather_mode=gather_mode)

    # 1) ELECTRA-small-ish config: XLA gather + aliased fused LayerNorm path.
    k1, k2, k3, k4, k5, key = jax.random.split(key, 6)
    B, S, H, vocab, max_pos = 2, 8, 128, 50, 16
    w, p, g, bta = make_params(k1, vocab, max_pos, H)
    ids = jax.random.randint(k2, (B, S), 0, vocab, dtype=jnp.int32)

    out = jax.block_until_ready(fwd(ids, w, p, g, bta))
    ref = reference(ids, w, p, g, bta)
    assert out.shape == (B, S, H)
    assert jnp.allclose(out.astype(jnp.float32), ref, atol=1e-4, rtol=1e-4)

    # Decode-style path with non-zero past_key_values_length.
    past = 4
    out_p = jax.block_until_ready(fwd(ids, w, p, g, bta, past_len=past))
    ref_p = reference(ids, w, p, g, bta, past_key_values_length=past)
    assert jnp.allclose(out_p.astype(jnp.float32), ref_p, atol=1e-4, rtol=1e-4)

    # 2) Fused in-kernel gather path (forced; "auto" picks it for >= 2 KiB rows).
    B2, S2, H2, vocab2, max_pos2 = 2, 16, 256, 64, 16
    w2, p2, g2, b2 = make_params(k3, vocab2, max_pos2, H2)
    ids2 = jax.random.randint(k4, (B2, S2), 0, vocab2, dtype=jnp.int32)
    out2 = jax.block_until_ready(fwd(ids2, w2, p2, g2, b2, gather_mode="fused"))
    ref2 = reference(ids2, w2, p2, g2, b2)
    assert jnp.allclose(out2.astype(jnp.float32), ref2, atol=1e-4, rtol=1e-4)

    # 3) S not a multiple of 8 -> padded seq tiles, output sliced back.
    S3 = 12
    ids3 = jax.random.randint(k5, (B, S3), 0, vocab, dtype=jnp.int32)
    out3 = jax.block_until_ready(fwd(ids3, w, p, g, bta))
    ref3 = reference(ids3, w, p, g, bta)
    assert out3.shape == (B, S3, H)
    assert jnp.allclose(out3.astype(jnp.float32), ref3, atol=1e-4, rtol=1e-4)

    # 4) bf16 tables and bf16 output (f32 statistics inside the kernel).
    w4, p4 = w.astype(jnp.bfloat16), p.astype(jnp.bfloat16)
    out4 = jax.block_until_ready(fwd(ids, w4, p4, g, bta))
    ref4 = reference(ids, w4, p4, g, bta)
    assert jnp.allclose(out4.astype(jnp.float32), ref4, atol=3e-2, rtol=3e-2)

    print("KERNEL_OK")
</pallas_src>

<mosaic_0001>
module attributes {stable_mosaic.version = 11 : i64} {
  func.func @_addln_kernel(%arg0: i32, %arg1: i32, %arg2: memref<1x8x128xf32, #tpu.memory_space<vmem>>, %arg3: memref<8x128xf32, #tpu.memory_space<vmem>>, %arg4: memref<1x128xf32, #tpu.memory_space<vmem>>, %arg5: memref<1x128xf32, #tpu.memory_space<vmem>>, %arg6: memref<1x8x128xf32, #tpu.memory_space<vmem>>) attributes {dimension_semantics = [#tpu.dimension_semantics<parallel>, #tpu.dimension_semantics<parallel>], iteration_bounds = array<i64: 1, 2>, scalar_prefetch = 0 : i64, scratch_operands = 0 : i64, tpu.core_type = #tpu.core_type<tc>, window_params = [{transform_indices = @transform_0, window_bounds = array<i64: 1, 8, 128>}, {transform_indices = @transform_1, window_bounds = array<i64: 8, 128>}, {pipeline_mode = #tpu.pipeline_mode<synchronous>, transform_indices = @transform_2, window_bounds = array<i64: 1, 128>}, {pipeline_mode = #tpu.pipeline_mode<synchronous>, transform_indices = @transform_3, window_bounds = array<i64: 1, 128>}, {transform_indices = @transform_4, window_bounds = array<i64: 1, 8, 128>}]} {
    %c0 = arith.constant 0 : index
    %c0_0 = arith.constant 0 : index
    %c0_1 = arith.constant 0 : index
    %0 = vector.load %arg2[%c0, %c0_0, %c0_1] : memref<1x8x128xf32, #tpu.memory_space<vmem>>, vector<1x8x128xf32>
    %1 = vector.shape_cast %0 : vector<1x8x128xf32> to vector<8x128xf32>
    %c0_2 = arith.constant 0 : index
    %c0_3 = arith.constant 0 : index
    %2 = vector.load %arg3[%c0_2, %c0_3] : memref<8x128xf32, #tpu.memory_space<vmem>>, vector<8x128xf32>
    %3 = arith.addf %1, %2 : vector<8x128xf32>
    %cst = arith.constant dense<0.000000e+00> : vector<8xf32>
    %4 = vector.multi_reduction <add>, %3, %cst [1] : vector<8x128xf32> to vector<8xf32>
    %5 = vector.shape_cast %4 : vector<8xf32> to vector<8x1xf32>
    %cst_4 = arith.constant 1.280000e+02 : f32
    %6 = vector.broadcast %cst_4 : f32 to vector<8x1xf32>
    %7 = arith.divf %5, %6 : vector<8x1xf32>
    %8 = vector.broadcast %7 : vector<8x1xf32> to vector<8x128xf32>
    %9 = arith.subf %3, %8 : vector<8x128xf32>
    %10 = arith.mulf %9, %9 : vector<8x128xf32>
    %cst_5 = arith.constant dense<0.000000e+00> : vector<8xf32>
    %11 = vector.multi_reduction <add>, %10, %cst_5 [1] : vector<8x128xf32> to vector<8xf32>
    %12 = vector.shape_cast %11 : vector<8xf32> to vector<8x1xf32>
    %cst_6 = arith.constant 1.280000e+02 : f32
    %13 = vector.broadcast %cst_6 : f32 to vector<8x1xf32>
    %14 = arith.divf %12, %13 : vector<8x1xf32>
    %15 = vector.broadcast %7 : vector<8x1xf32> to vector<8x128xf32>
    %16 = arith.subf %3, %15 : vector<8x128xf32>
    %cst_7 = arith.constant 9.99999996E-13 : f32
    %17 = vector.broadcast %cst_7 : f32 to vector<8x1xf32>
    %18 = arith.addf %14, %17 : vector<8x1xf32>
    %19 = math.rsqrt %18 : vector<8x1xf32>
    %20 = vector.broadcast %19 : vector<8x1xf32> to vector<8x128xf32>
    %21 = arith.mulf %16, %20 : vector<8x128xf32>
    %c0_8 = arith.constant 0 : index
    %c0_9 = arith.constant 0 : index
    %22 = vector.load %arg4[%c0_8, %c0_9] : memref<1x128xf32, #tpu.memory_space<vmem>>, vector<1x128xf32>
    %c0_10 = arith.constant 0 : index
    %c0_11 = arith.constant 0 : index
    %23 = vector.load %arg5[%c0_10, %c0_11] : memref<1x128xf32, #tpu.memory_space<vmem>>, vector<1x128xf32>
    %24 = vector.broadcast %22 : vector<1x128xf32> to vector<8x128xf32>
    %25 = arith.mulf %21, %24 : vector<8x128xf32>
    %26 = vector.broadcast %23 : vector<1x128xf32> to vector<8x128xf32>
    %27 = arith.addf %25, %26 : vector<8x128xf32>
    %28 = vector.shape_cast %27 : vector<8x128xf32> to vector<1x8x128xf32>
    %c0_12 = arith.constant 0 : index
    %c0_13 = arith.constant 0 : index
    %c0_14 = arith.constant 0 : index
    %29 = vector.load %arg6[%c0_12, %c0_13, %c0_14] : memref<1x8x128xf32, #tpu.memory_space<vmem>>, vector<1x8x128xf32>
    tpu.vector_store %arg6[%c0_12, %c0_13, %c0_14], %28 {strides = array<i32>} : memref<1x8x128xf32, #tpu.memory_space<vmem>>, vector<1x8x128xf32>,
    return
  }
  func.func @transform_0(%arg0: i32, %arg1: i32) -> (i32, i32, i32) {
    %c0_i32 = arith.constant 0 : i32
    %c0_i32_0 = arith.constant 0 : i32
    return %arg1, %arg0, %c0_i32 : i32, i32, i32
  }
  func.func @transform_1(%arg0: i32, %arg1: i32) -> (i32, i32) {
    %c0_i32 = arith.constant 0 : i32
    %c0_i32_0 = arith.constant 0 : i32
    return %arg0, %c0_i32 : i32, i32
  }
  func.func @transform_2(%arg0: i32, %arg1: i32) -> (i32, i32) {
    %c0_i32 = arith.constant 0 : i32
    %c0_i32_0 = arith.constant 0 : i32
    %c0_i32_1 = arith.constant 0 : i32
    return %c0_i32, %c0_i32_0 : i32, i32
  }
  func.func @transform_3(%arg0: i32, %arg1: i32) -> (i32, i32) {
    %c0_i32 = arith.constant 0 : i32
    %c0_i32_0 = arith.constant 0 : i32
    %c0_i32_1 = arith.constant 0 : i32
    return %c0_i32, %c0_i32_0 : i32, i32
  }
  func.func @transform_4(%arg0: i32, %arg1: i32) -> (i32, i32, i32) {
    %c0_i32 = arith.constant 0 : i32
    %c0_i32_0 = arith.constant 0 : i32
    return %arg1, %arg0, %c0_i32 : i32, i32, i32
  }
}

</mosaic_0001>

<llo_original>
// kernel: fwd.1
$region0: #{fwd.1}
  #allocation0 [shape = 'u32[]', space=smem, size = 0x4, offset = 0x4, fixed_abs, tag = 'smem constant byte address 0x4 - core index']
  #allocation1 [shape = 'u32[144,128]{1,0:T(1,128)}', space=vmem, size = 0x12000, scoped, tag = 'internal scratch']
  %s0 = inlined_call_operand.hbm [shape: f32[2,8,128], index: 0, kind: input, shape index: {}, may-alias: {0,4}]
  %s1 = inlined_call_operand.vmem [shape: f32[8,128], index: 1, kind: input, shape index: {}]
  %s2 = inlined_call_operand.vmem [shape: f32[1,128], index: 2, kind: input, shape index: {}]
  %s3 = inlined_call_operand.vmem [shape: f32[1,128], index: 3, kind: input, shape index: {}]
  %s4 = inlined_call_operand.hbm [shape: f32[2,8,128], index: 4, kind: output, shape index: {}, may-alias: {0,4}]
  %s5 = sld [smem:[#allocation0]]
  $region53: #{fwd.1} parent=0
    _
  %s7 = ssub.s32 1, %s5
  %s8 = scalar_select 0, %s7, %s5
  $region1: #{fwd.1} parent=0
    #allocation2 [shape = 'u8[8192]{0}', space=vmem, size = 0x2000, scoped, tag = 'input window, operand 0']
    #allocation3 [shape = 's32[2]{0}', space=sflag, size = 0x8, scoped, tag = 'scoped memory for fwd.1']
    #allocation4 [shape = 's32[2]{0}', space=sflag, size = 0x8, scoped, tag = 'scoped memory for fwd.1']
    #allocation5 [shape = 'u8[8192]{0}', space=vmem, size = 0x2000, scoped, tag = 'output window, operand 0']
    %9 = vsyncpa [#allocation3], 0
    %s10 = scalar_lea.sflag [#allocation3], 1
    %11 = vsyncpa %s10, 0
    %12 = vsyncpa [#allocation4], 0
    %s13 = scalar_lea.sflag [#allocation4], 1
    %14 = vsyncpa %s13, 0
    loop: start=0, step=1, limit=4
    $region2: #{fwd.1} parent=1 // loop_pre_header
      _
    $region3: #{fwd.1} parent=1 // loop_header
      %s16 = sphi 0, %s20
      %p17 = scmp.ge.s32.totalorder %s16, 4
      %s23 = sphi 0, %s35
      %s24 = sphi 0, %s31
      %s25 = sphi 0, %s23
      %s26 = sphi 0, %s24
      %s27 = sphi 0, %s25
      %s28 = sphi 0, %s26
      %s40 = sphi 0, %s42
      %s43 = sphi 0, %s40
      %s44 = sphi 0, %s43
      %s60 = sphi 0, %s44
      %s66 = sphi 0, %s68
      %s69 = sphi 0, %s66
      %s70 = sphi 0, %s69
      %s86 = sphi 0, %s70
      %s90 = sphi 0, %s90
      %s92 = sphi 0, %s90
      %s93 = sphi 0, %s92
      %s107 = sphi 0, %s93
      %s111 = sphi 0, %s111
      %s113 = sphi 0, %s111
      %s114 = sphi 0, %s113
      %s128 = sphi 0, %s114
      %s136 = sphi 0, %s138
      %s139 = sphi 0, %s136
      %s140 = sphi 0, %s139
      %s156 = sphi 0, %s140
    $region4: #{fwd.1} parent=1 // loop_header_branch
      %19 = sbr.rel (%p17) target = $region8
    $region5: #{fwd.1} parent=1 // loop_body
      %s21 = ssub.s32 %s16, 1
      %s22 = ssub.s32 %s16, 2
      %s29 = sadd.s32 1, %s24
      %p30 = scmp.ge.s32.totalorder %s29, 2
      %s31 = scalar_select %p30, 0, %s29
      %s32 = sadd.s32 1, %s23
      %s33 = scalar_select %p30, %s32, %s23
      %p34 = scmp.ge.s32.totalorder %s33, 1
      %s35 = scalar_select %p34, 0, %s33
      %s36 = ssub.s32 %s24, %s31
      %s37 = ssub.s32 %s23, %s35
      %s38 = sor.u32 %s36, %s37
      %p39 = scmp.eq.s32.totalorder %s38, 0
      %s41 = sadd.s32 %s40, 1
      %s42 = scalar_select %p39, %s40, %s41
      %p45 = pneg %p39
      %p46 = scmp.eq.s32.totalorder %s16, 1
      %p47 = por %p45, %p46
      %p48 = scmp.ne.s32.totalorder %s40, %s43
      %p49 = scmp.eq.s32.totalorder %s16, 0
      %p50 = por %p48, %p49
      %p51 = scmp.ne.s32.totalorder %s40, %s43
      %p52 = scmp.eq.s32.totalorder %s21, 1
      %p53 = por %p51, %p52
      %p54 = scmp.ne.s32.totalorder %s43, %s44
      %p55 = scmp.eq.s32.totalorder %s21, 0
      %p56 = por %p54, %p55
      %p57 = scmp.ne.s32.totalorder %s43, %s44
      %p58 = scmp.eq.s32.totalorder %s22, 1
      %p59 = por %p57, %p58
      %p61 = scmp.ne.s32.totalorder %s44, %s60
      %p62 = scmp.eq.s32.totalorder %s22, 0
      %p63 = por %p61, %p62
      %s64 = ssub.s32 %s23, %s35
      %p65 = scmp.eq.s32.totalorder %s64, 0
      %s67 = sadd.s32 %s66, 1
      %s68 = scalar_select %p65, %s66, %s67
      %p71 = pneg %p65
      %p72 = scmp.eq.s32.totalorder %s16, 1
      %p73 = por %p71, %p72
      %p74 = scmp.ne.s32.totalorder %s66, %s69
      %p75 = scmp.eq.s32.totalorder %s16, 0
      %p76 = por %p74, %p75
      %p77 = scmp.ne.s32.totalorder %s66, %s69
      %p78 = scmp.eq.s32.totalorder %s21, 1
      %p79 = por %p77, %p78
      %p80 = scmp.ne.s32.totalorder %s69, %s70
      %p81 = scmp.eq.s32.totalorder %s21, 0
      %p82 = por %p80, %p81
      %p83 = scmp.ne.s32.totalorder %s69, %s70
      %p84 = scmp.eq.s32.totalorder %s22, 1
      %p85 = por %p83, %p84
      %p87 = scmp.ne.s32.totalorder %s70, %s86
      %p88 = scmp.eq.s32.totalorder %s22, 0
      %p89 = por %p87, %p88
      %s91 = sadd.s32 %s90, 1
      %p94 = scmp.eq.s32.totalorder %s16, 1
      %p95 = scmp.ne.s32.totalorder %s90, %s92
      %p96 = scmp.eq.s32.totalorder %s16, 0
      %p97 = por %p95, %p96
      %p98 = scmp.ne.s32.totalorder %s90, %s92
      %p99 = scmp.eq.s32.totalorder %s21, 1
      %p100 = por %p98, %p99
      %p101 = scmp.ne.s32.totalorder %s92, %s93
      %p102 = scmp.eq.s32.totalorder %s21, 0
      %p103 = por %p101, %p102
      %p104 = scmp.ne.s32.totalorder %s92, %s93
      %p105 = scmp.eq.s32.totalorder %s22, 1
      %p106 = por %p104, %p105
      %p108 = scmp.ne.s32.totalorder %s93, %s107
      %p109 = scmp.eq.s32.totalorder %s22, 0
      %p110 = por %p108, %p109
      %s112 = sadd.s32 %s111, 1
      %p115 = scmp.eq.s32.totalorder %s16, 1
      %p116 = scmp.ne.s32.totalorder %s111, %s113
      %p117 = scmp.eq.s32.totalorder %s16, 0
      %p118 = por %p116, %p117
      %p119 = scmp.ne.s32.totalorder %s111, %s113
      %p120 = scmp.eq.s32.totalorder %s21, 1
      %p121 = por %p119, %p120
      %p122 = scmp.ne.s32.totalorder %s113, %s114
      %p123 = scmp.eq.s32.totalorder %s21, 0
      %p124 = por %p122, %p123
      %p125 = scmp.ne.s32.totalorder %s113, %s114
      %p126 = scmp.eq.s32.totalorder %s22, 1
      %p127 = por %p125, %p126
      %p129 = scmp.ne.s32.totalorder %s114, %s128
      %p130 = scmp.eq.s32.totalorder %s22, 0
      %p131 = por %p129, %p130
      %s132 = ssub.s32 %s24, %s31
      %s133 = ssub.s32 %s23, %s35
      %s134 = sor.u32 %s132, %s133
      %p135 = scmp.eq.s32.totalorder %s134, 0
      %s137 = sadd.s32 %s136, 1
      %s138 = scalar_select %p135, %s136, %s137
      %p141 = pneg %p135
      %p142 = scmp.eq.s32.totalorder %s16, 1
      %p143 = por %p141, %p142
      %p144 = scmp.ne.s32.totalorder %s136, %s139
      %p145 = scmp.eq.s32.totalorder %s16, 0
      %p146 = por %p144, %p145
      %p147 = scmp.ne.s32.totalorder %s136, %s139
      %p148 = scmp.eq.s32.totalorder %s21, 1
      %p149 = por %p147, %p148
      %p150 = scmp.ne.s32.totalorder %s139, %s140
      %p151 = scmp.eq.s32.totalorder %s21, 0
      %p152 = por %p150, %p151
      %p153 = scmp.ne.s32.totalorder %s139, %s140
      %p154 = scmp.eq.s32.totalorder %s22, 1
      %p155 = por %p153, %p154
      %p157 = scmp.ne.s32.totalorder %s140, %s156
      %p158 = scmp.eq.s32.totalorder %s22, 0
      %p159 = por %p157, %p158
      %p160 = scmp.le.s32.totalorder 1, %s16
      %p161 = scmp.lt.s32.totalorder %s16, 3
      %p162 = pnand %p160, %p161
      %p163 = pneg %p162
      // Predicated region
      $region9: #{fwd.1} parent=5 // pred_check
        _
      $region10: #{fwd.1} parent=5 // pred_check_branch
        %165 = sbr.rel (%p162) target = $region12
      $region11: #{fwd.1} parent=5 // pred_region
        %s166 = ssub.s32 %s16, 1
        // Predicated region
        $region13: #{fwd.1} parent=11 // pred_check
          %p167 = pneg %p82
        $region14: #{fwd.1} parent=11 // pred_check_branch
          %169 = sbr.rel (%p167) target = $region16
        $region15: #{fwd.1} parent=11 // pred_region
          %p170 = scmp.lt.s32.totalorder %s25, 0
          %s171 = scalar_select %p170, %s25, 0
          %s172 = smul.addr %s171, 8
          %s173 = scalar_lea.vmem %s1, %s172
        $region16: #{fwd.1} parent=11 // pred_fallthru
          _
        // Predicated region
        $region17: #{fwd.1} parent=11 // pred_check
          %p174 = pneg %p103
        $region18: #{fwd.1} parent=11 // pred_check_branch
          %176 = sbr.rel (%p174) target = $region20
        $region19: #{fwd.1} parent=11 // pred_region
          _
        $region20: #{fwd.1} parent=11 // pred_fallthru
          _
        // Predicated region
        $region21: #{fwd.1} parent=11 // pred_check
          %p177 = pneg %p124
        $region22: #{fwd.1} parent=11 // pred_check_branch
          %179 = sbr.rel (%p177) target = $region24
        $region23: #{fwd.1} parent=11 // pred_region
          _
        $region24: #{fwd.1} parent=11 // pred_fallthru
          _
      $region12: #{fwd.1} parent=5 // pred_fallthru
        _
      %p180 = scmp.lt.s32.totalorder %s16, 2
      // Predicated region
      $region25: #{fwd.1} parent=5 // pred_check
        %p181 = pneg %p180
      $region26: #{fwd.1} parent=5 // pred_check_branch
        %183 = sbr.rel (%p181) target = $region28
      $region27: #{fwd.1} parent=5 // pred_region
        // Predicated region
        $region29: #{fwd.1} parent=27 // pred_check
          %p184 = pneg %p50
        $region30: #{fwd.1} parent=27 // pred_check_branch
          %186 = sbr.rel (%p184) target = $region32
        $region31: #{fwd.1} parent=27 // pred_region
          %s187 = sand.u32 %s40, 1
          %s188 = scalar_lea.sflag [#allocation3], %s187
          %s189 = sand.u32 %s40, 1
          %s190 = smul.addr %s189, 8
          %s191 = scalar_lea.vmem [#allocation2], %s190
          %s193 = ssub.s32 128, 128
          %194 = vsyncadd %s188, %s193
          %s195 = sadd.s32 %s23, %s24
          %s196 = smul.addr %s195, 128
          %s197 = scalar_lea.hbm %s0, %s196
          %s199 = sshll.u32 %s191, 4
          %s200 = int_to_ptr.vmem [resolvable:$true] %s199
          %202 = dma.hbm_to_vmem [thread:$0]  %s197, 128, %s200, %s188
        $region32: #{fwd.1} parent=27 // pred_fallthru
          _
      $region28: #{fwd.1} parent=5 // pred_fallthru
        _
      %p203 = scmp.le.s32.totalorder 1, %s16
      %p204 = scmp.lt.s32.totalorder %s16, 3
      %p205 = pnand %p203, %p204
      %p206 = pneg %p205
      // Predicated region
      $region33: #{fwd.1} parent=5 // pred_check
        _
      $region34: #{fwd.1} parent=5 // pred_check_branch
        %208 = sbr.rel (%p205) target = $region36
      $region35: #{fwd.1} parent=5 // pred_region
        %s209 = ssub.s32 %s16, 1
        %s210 = sand.u32 %s43, 1
        %s211 = scalar_lea.sflag [#allocation3], %s210
        %s212 = sand.u32 %s43, 1
        %s213 = smul.addr %s212, 8
        %s214 = scalar_lea.vmem [#allocation2], %s213
        // Predicated region
        $region37: #{fwd.1} parent=35 // pred_check
          %p215 = pneg %p56
        $region38: #{fwd.1} parent=35 // pred_check_branch
          %217 = sbr.rel (%p215) target = $region40
        $region39: #{fwd.1} parent=35 // pred_region
          %218 = dma.done %s211, 128
        $region40: #{fwd.1} parent=35 // pred_fallthru
          _
        %s219 = sand.u32 %s43, 1
        %s220 = scalar_lea.sflag [#allocation3], %s219
        %s221 = sand.u32 %s43, 1
        %s222 = smul.addr %s221, 8
        %s223 = scalar_lea.vmem [#allocation2], %s222
        %p224 = pneg %p56
        %p225 = pneg %p53
        %p226 = scmp.lt.s32.totalorder %s25, 0
        %s227 = scalar_select %p226, %s25, 0
        %s228 = smul.addr %s227, 8
        %s229 = scalar_lea.vmem %s1, %s228
        %p230 = pneg %p82
        %p231 = pneg %p79
        %p232 = pneg %p103
        %p233 = pneg %p100
        %p234 = pneg %p124
        %p235 = pneg %p121
        %p236 = pneg %p152
        %p237 = pneg %p149
        %s238 = sand.u32 %s139, 1
        %s239 = scalar_lea.sflag [#allocation4], %s238
        %s240 = sand.u32 %s139, 1
        %s241 = smul.addr %s240, 8
        %s242 = scalar_lea.vmem [#allocation5], %s241
        %p243 = scmp.lt.s32.totalorder %s25, 0
        %s244 = scalar_select %p243, %s25, 0
        %s245 = smul.addr %s244, 8
        %s246 = scalar_lea.vmem %s1, %s245
        %v247 = vld [vmem:[%s214] sm:$0xff]
        %v248 = vld [vmem:[%s246] sm:$0xff]
        %v249 = vadd.f32 %v247, %v248
        %250 = vadd.xlane.f32.xlu0 %v249
        %v251 = vpop.xlane.xlu0 %250
        %v252 = vrcp.pop 128.0
        %v253 = vmul.f32 %v251, %v252
        %v254 = vsub.f32 %v249, %v253
        %v255 = vmul.f32 %v254, %v254
        %256 = vadd.xlane.f32.xlu0 %v255
        %v257 = vpop.xlane.xlu0 %256
        %v258 = vmul.f32 %v257, %v252
        %v259 = vadd.f32 %v258, 1e-12
        %v260 = vrsqrt.pop %v259
        %v261 = vmul.f32 %v254, %v260
        %v262 = vld [vmem:[%s2] sm:$0x1]
        %v263 = vld [vmem:[%s3] sm:$0x1]
        %v265 = vlaneseq
        %v266 = vshrl.u32 %v265, 7
        %v267 = vsub.s32 0, %v266
        %v268 = vrot.slane %v262, %v267
        %v270 = vmul.f32 %v261, %v268
        %v272 = vlaneseq
        %v273 = vshrl.u32 %v272, 7
        %v274 = vsub.s32 0, %v273
        %v275 = vrot.slane %v263, %v274
        %v277 = vadd.f32 %v270, %v275
        %278 = vst [vmem:[%s242] sm:$0xff] %v277
        %s279 = sand.u32 %s139, 1
        %s280 = scalar_lea.sflag [#allocation4], %s279
        %s281 = sand.u32 %s139, 1
        %s282 = smul.addr %s281, 8
        %s283 = scalar_lea.vmem [#allocation5], %s282
        // Predicated region
        $region41: #{fwd.1} parent=35 // pred_check
          %p284 = pneg %p149
        $region42: #{fwd.1} parent=35 // pred_check_branch
          %286 = sbr.rel (%p284) target = $region44
        $region43: #{fwd.1} parent=35 // pred_region
          %s288 = ssub.s32 128, 128
          %289 = vsyncadd %s280, %s288
          %s290 = sadd.s32 %s25, %s26
          %s291 = smul.addr %s290, 128
          %s292 = scalar_lea.hbm %s4, %s291
          %s294 = sshll.u32 %s283, 4
          %s295 = int_to_ptr.vmem [resolvable:$true] %s294
          %297 = dma.vmem_to_hbm [thread:$0]  %s295, 128, %s292, %s280
        $region44: #{fwd.1} parent=35 // pred_fallthru
          _
      $region36: #{fwd.1} parent=5 // pred_fallthru
        _
      %p298 = scmp.le.s32.totalorder 2, %s16
      // Predicated region
      $region45: #{fwd.1} parent=5 // pred_check
        %p299 = pneg %p298
      $region46: #{fwd.1} parent=5 // pred_check_branch
        %301 = sbr.rel (%p299) target = $region48
      $region47: #{fwd.1} parent=5 // pred_region
        %s302 = ssub.s32 %s16, 2
        // Predicated region
        $region49: #{fwd.1} parent=47 // pred_check
          %p303 = pneg %p155
        $region50: #{fwd.1} parent=47 // pred_check_branch
          %305 = sbr.rel (%p303) target = $region52
        $region51: #{fwd.1} parent=47 // pred_region
          %s306 = sand.u32 %s140, 1
          %s307 = scalar_lea.sflag [#allocation4], %s306
          %s308 = sand.u32 %s140, 1
          %s309 = smul.addr %s308, 8
          %s310 = scalar_lea.vmem [#allocation5], %s309
          %311 = dma.done %s307, 128
        $region52: #{fwd.1} parent=47 // pred_fallthru
          _
      $region48: #{fwd.1} parent=5 // pred_fallthru
        _
    $region6: #{fwd.1} parent=1 // loop_footer
      %s20 = sadd.s32 1, %s16
    $region7: #{fwd.1} parent=1 // loop_footer_branch
      %15 = sbr.rel target = $region3
    $region8: #{fwd.1} parent=1 // loop_exit
      _
    %312 = vsyncpa [#allocation3], 1
    %s313 = scalar_lea.sflag [#allocation3], 1
    %314 = vsyncpa %s313, 1
    %315 = vsyncpa [#allocation4], 1
    %s316 = scalar_lea.sflag [#allocation4], 1
    %317 = vsyncpa %s316, 1

</llo_original>
